<compile_context>
chip_gen: v7x
topology: tpu7x:2x2x1
jax: 0.10.0
libtpu: 0.0.40
codegen_flags: <defaults>
</compile_context>

<pallas_src>
import math
from typing import NamedTuple

import jax
import jax.numpy as jnp
from jax import lax
from jax.experimental import pallas as pl
from jax.experimental.pallas import tpu as pltpu


def _round_up(x, m):
    return ((x + m - 1) // m) * m


def _tile_bytes(shape, dtype):
    """Physical VMEM bytes of one tile (minor dim pads to 128, 2nd-minor to 8)."""
    s = list(shape)
    s[-1] = _round_up(s[-1], 128)
    if len(s) >= 2:
        s[-2] = _round_up(s[-2], 8)
    n = 1
    for d in s:
        n *= d
    return n * jnp.dtype(dtype).itemsize


def _vmem_limit_bytes(footprint_bytes):
    """Generation-aware scoped-VMEM limit (~75% of physical VMEM)."""
    phys = 128 << 20
    try:
        info = pltpu.get_tpu_info()
        phys = int(getattr(info, "vmem_capacity_bytes", phys))
    except Exception:  # info unavailable -> conservative default
        pass
    cap = phys * 3 // 4                    # ~96 MiB on v5e/v6e, ~48 MiB on v7x
    want = footprint_bytes + (8 << 20)     # tile footprint + headroom
    return int(min(max(want, 32 << 20), max(cap, want)))


def _lora_kernel(x_ref, w_ref, b_ref, xa_ref, bm_ref, o_ref, acc_ref):
    """One (tm, tn) output tile, accumulating x @ W^T over the K grid axis.

    x_ref : (tm, tk)  activations (compute dtype)
    w_ref : (tn, tk)  frozen W, natural (out, in) layout
    b_ref : (1,  tn)  frozen bias (f32)
    xa_ref: (tm, r)   precomputed alpha * (x @ A^T)  (compute dtype)
    bm_ref: (tn, r)   lora_B, natural (out, r) layout
    o_ref : (tm, tn)  output
    acc_ref: (tm, tn) f32 scratch accumulator
    """
    k = pl.program_id(2)

    # Base-path partial: x . W^T (contract last dims; no transpose needed).
    partial = lax.dot_general(
        x_ref[...], w_ref[...], (((1,), (1,)), ((), ())),
        preferred_element_type=jnp.float32)

    @pl.when(k == 0)
    def _first():
        acc_ref[...] = partial          # direct assign: no zero-init pass

    @pl.when(k > 0)
    def _rest():
        acc_ref[...] += partial

    @pl.when(k == pl.num_programs(2) - 1)
    def _finalize():
        # Up-projection of the tiny rank-r intermediate: (tm, r) @ (r, tn).
        lora = lax.dot_general(
            xa_ref[...], bm_ref[...], (((1,), (1,)), ((), ())),
            preferred_element_type=jnp.float32)
        o_ref[...] = (acc_ref[...] + b_ref[...].astype(jnp.float32) + lora
                      ).astype(o_ref.dtype)


class LoRAParams(NamedTuple):
    w_p: jax.Array       # (N_p, K_p)  compute dtype, zero padded
    bias_p: jax.Array    # (1, N_p)    float32, zero padded
    a_scaled: jax.Array  # (r, in_f)   compute dtype, alpha folded in
    bm_p: jax.Array      # (N_p, r)    compute dtype, zero padded
    in_f: int
    out_f: int
    r: int
    tn: int
    tk: int
    tm: int
    compute_dtype: object


def prepare_lora_params(w, b, a, bm, *, alpha=1.0, tm=512, tn=512, tk=1024,
                        compute_dtype=None):
    """One-time (model-load) weight prep: pad, cast, fold alpha into A.

    w: (out, in)  b: (out,)  a: (r, in)  bm: (out, r)
    """
    out_f, in_f = w.shape
    r = a.shape[0]
    assert a.shape == (r, in_f) and bm.shape == (out_f, r) and b.shape == (out_f,)
    cd = jnp.dtype(compute_dtype) if compute_dtype is not None else jnp.dtype(w.dtype)

    # Lane-dense minor dims (multiples of 128), capped at the padded extents.
    tn = min(tn, _round_up(out_f, 128))
    tk = min(tk, _round_up(in_f, 128))
    N_p = _round_up(out_f, tn)
    K_p = _round_up(in_f, tk)

    w_p = jnp.pad(w.astype(cd), ((0, N_p - out_f), (0, K_p - in_f)))
    bm_p = jnp.pad(bm.astype(cd), ((0, N_p - out_f), (0, 0)))
    bias_p = jnp.pad(b.astype(jnp.float32), (0, N_p - out_f)).reshape(1, N_p)
    a_scaled = (alpha * a.astype(jnp.float32)).astype(cd)   # fold alpha once

    return LoRAParams(w_p, bias_p, a_scaled, bm_p,
                      in_f, out_f, r, tn, tk, tm, cd)


def lora_linear(x, params: LoRAParams):
    """y = x @ W^T + b + alpha * (x @ A^T) @ B^T, shape (M, out_f)."""
    M, in_f = x.shape
    assert in_f == params.in_f
    out_f, r = params.out_f, params.r
    tn, tk = params.tn, params.tk
    N_p, K_p = params.w_p.shape
    cd = params.compute_dtype

    tm = min(params.tm, _round_up(M, 8))
    M_p = _round_up(M, tm)

    x_c = x.astype(cd)
    # LoRA down-projection, hoisted out of the K loop: tiny (M, r) result.
    xa = lax.dot_general(x_c, params.a_scaled, (((1,), (1,)), ((), ())),
                         preferred_element_type=jnp.float32).astype(cd)
    xa_p = jnp.pad(xa, ((0, M_p - M), (0, 0)))
    x_p = jnp.pad(x_c, ((0, M_p - M), (0, K_p - in_f)))

    grid = (M_p // tm, N_p // tn, K_p // tk)

    # Double-buffered input/output tiles + f32 accumulator scratch.
    footprint = (
        2 * _tile_bytes((tm, tk), cd)                # x
        + 2 * _tile_bytes((tn, tk), cd)              # W
        + 2 * _tile_bytes((1, tn), jnp.float32)      # bias
        + 2 * _tile_bytes((tm, r), cd)               # xa
        + 2 * _tile_bytes((tn, r), cd)               # B
        + 2 * _tile_bytes((tm, tn), x.dtype)         # out
        + _tile_bytes((tm, tn), jnp.float32)         # acc scratch
    )

    cost = pl.CostEstimate(
        flops=int(2 * M * in_f * out_f + 2 * M * r * out_f),
        transcendentals=0,
        bytes_accessed=int(
            x_p.size * x_p.dtype.itemsize
            + params.w_p.size * params.w_p.dtype.itemsize
            + params.bm_p.size * params.bm_p.dtype.itemsize
            + xa_p.size * xa_p.dtype.itemsize
            + params.bias_p.size * 4
            + M_p * N_p * jnp.dtype(x.dtype).itemsize),
    )

    out_p = pl.pallas_call(
        _lora_kernel,
        out_shape=jax.ShapeDtypeStruct((M_p, N_p), x.dtype),
        grid_spec=pltpu.PrefetchScalarGridSpec(
            num_scalar_prefetch=0,
            grid=grid,
            in_specs=[
                pl.BlockSpec((tm, tk), lambda i, j, k: (i, k)),   # x
                pl.BlockSpec((tn, tk), lambda i, j, k: (j, k)),   # W  (out, in)
                pl.BlockSpec((1, tn), lambda i, j, k: (0, j)),    # bias
                pl.BlockSpec((tm, r), lambda i, j, k: (i, 0)),    # xa (M, r)
                pl.BlockSpec((tn, r), lambda i, j, k: (j, 0)),    # B  (out, r)
            ],
            out_specs=pl.BlockSpec((tm, tn), lambda i, j, k: (i, j)),
            scratch_shapes=[pltpu.VMEM((tm, tn), jnp.float32)],
        ),
        compiler_params=pltpu.CompilerParams(
            dimension_semantics=("parallel", "parallel", "arbitrary"),
            vmem_limit_bytes=_vmem_limit_bytes(footprint),
        ),
        cost_estimate=cost,
    )(x_p, params.w_p, params.bias_p, xa_p, params.bm_p)

    return out_p[:M, :out_f]


if __name__ == "__main__":
    key = jax.random.PRNGKey(0)
    k_x, k_w, k_b, k_a, k_rest = jax.random.split(key, 5)

    # ---- Test 1: module-faithful init (lora_B zeros), small shapes ----
    batch, in_features, out_features, r, alpha = 16, 32, 32, 4, 1.0
    bound_w = 1.0 / math.sqrt(in_features)
    w = jax.random.uniform(k_w, (out_features, in_features),
                           minval=-bound_w, maxval=bound_w, dtype=jnp.float32)
    b = jax.random.uniform(k_b, (out_features,),
                           minval=-bound_w, maxval=bound_w, dtype=jnp.float32)
    # lora_A: kaiming_uniform_(a=sqrt(5)); lora_B: zeros (as in the module).
    bound_a = math.sqrt(6.0 / ((1.0 + 5.0) * in_features))
    a = jax.random.uniform(k_a, (r, in_features),
                           minval=-bound_a, maxval=bound_a, dtype=jnp.float32)
    bm = jnp.zeros((out_features, r), dtype=jnp.float32)
    x = jax.random.normal(k_x, (batch, in_features), dtype=jnp.float32)

    params = prepare_lora_params(w, b, a, bm, alpha=alpha)
    y = jax.block_until_ready(lora_linear(x, params))
    y_ref = x @ w.T + b + alpha * ((x @ a.T) @ bm.T)
    assert y.shape == (batch, out_features)
    assert jnp.allclose(y, y_ref, atol=1e-5, rtol=1e-5)

    # ---- Test 2: non-zero lora_B + ragged shapes (exercise padding path) ----
    batch2, in2, out2, r2, alpha2 = 20, 96, 160, 4, 0.5
    k_w2, k_b2, k_a2, k_bm2, k_x2 = jax.random.split(k_rest, 5)
    w2 = jax.random.normal(k_w2, (out2, in2), dtype=jnp.float32) * 0.05
    b2 = jax.random.normal(k_b2, (out2,), dtype=jnp.float32) * 0.05
    a2 = jax.random.normal(k_a2, (r2, in2), dtype=jnp.float32) * 0.05
    bm2 = jax.random.normal(k_bm2, (out2, r2), dtype=jnp.float32) * 0.05
    x2 = jax.random.normal(k_x2, (batch2, in2), dtype=jnp.float32)

    params2 = prepare_lora_params(w2, b2, a2, bm2, alpha=alpha2)
    y2 = jax.block_until_ready(lora_linear(x2, params2))
    y2_ref = x2 @ w2.T + b2 + alpha2 * ((x2 @ a2.T) @ bm2.T)
    assert y2.shape == (batch2, out2)
    assert jnp.allclose(y2, y2_ref, atol=1e-4, rtol=1e-4)

    # ---- Test 3: bf16 compute path (MXU-friendly), f32 accumulation ----
    params3 = prepare_lora_params(w2, b2, a2, bm2, alpha=alpha2,
                                  compute_dtype=jnp.bfloat16)
    y3 = jax.block_until_ready(lora_linear(x2, params3))
    assert y3.shape == (batch2, out2)
    assert jnp.allclose(y3, y2_ref, atol=3e-2, rtol=3e-2)

    print("KERNEL_OK")
</pallas_src>

<mosaic_0001>
module attributes {stable_mosaic.version = 11 : i64} {
  func.func @_lora_kernel(%arg0: i32, %arg1: i32, %arg2: i32, %arg3: memref<16x128xf32, #tpu.memory_space<vmem>>, %arg4: memref<128x128xf32, #tpu.memory_space<vmem>>, %arg5: memref<1x128xf32, #tpu.memory_space<vmem>>, %arg6: memref<16x4xf32, #tpu.memory_space<vmem>>, %arg7: memref<128x4xf32, #tpu.memory_space<vmem>>, %arg8: memref<16x128xf32, #tpu.memory_space<vmem>>, %arg9: memref<16x128xf32, #tpu.memory_space<vmem>>) attributes {dimension_semantics = [#tpu.dimension_semantics<parallel>, #tpu.dimension_semantics<parallel>, #tpu.dimension_semantics<arbitrary>], iteration_bounds = array<i64: 1, 1, 1>, scalar_prefetch = 0 : i64, scratch_operands = 1 : i64, tpu.core_type = #tpu.core_type<tc>, window_params = [{transform_indices = @transform_0, window_bounds = array<i64: 16, 128>}, {transform_indices = @transform_1, window_bounds = array<i64: 128, 128>}, {transform_indices = @transform_2, window_bounds = array<i64: 1, 128>}, {transform_indices = @transform_3, window_bounds = array<i64: 16, 4>}, {transform_indices = @transform_4, window_bounds = array<i64: 128, 4>}, {transform_indices = @transform_5, window_bounds = array<i64: 16, 128>}]} {
    %c0 = arith.constant 0 : index
    %c0_0 = arith.constant 0 : index
    %0 = vector.load %arg3[%c0, %c0_0] : memref<16x128xf32, #tpu.memory_space<vmem>>, vector<16x128xf32>
    %c0_1 = arith.constant 0 : index
    %c0_2 = arith.constant 0 : index
    %1 = vector.load %arg4[%c0_1, %c0_2] : memref<128x128xf32, #tpu.memory_space<vmem>>, vector<128x128xf32>
    %cst = arith.constant dense<0.000000e+00> : vector<16x128xf32>
    %2 = tpu.matmul %0, %1, %cst {dimension_numbers = #tpu.dot_dimension_numbers<[1], [1], [0], [0], [0, 0, 1, 0], [], []>} : vector<16x128xf32>, vector<128x128xf32>, vector<16x128xf32> -> vector<16x128xf32>
    %c0_i32 = arith.constant 0 : i32
    %3 = arith.cmpi eq, %arg2, %c0_i32 : i32
    %4 = arith.extui %3 : i1 to i32
    %c0_i32_3 = arith.constant 0 : i32
    %5 = arith.cmpi ne, %4, %c0_i32_3 : i32
    scf.if %5 {
      %c0_8 = arith.constant 0 : index
      %c0_9 = arith.constant 0 : index
      %12 = vector.load %arg9[%c0_8, %c0_9] : memref<16x128xf32, #tpu.memory_space<vmem>>, vector<16x128xf32>
      tpu.vector_store %arg9[%c0_8, %c0_9], %2 {strides = array<i32>} : memref<16x128xf32, #tpu.memory_space<vmem>>, vector<16x128xf32>,
    } else {
    }
    %c0_i32_4 = arith.constant 0 : i32
    %6 = arith.cmpi sgt, %arg2, %c0_i32_4 : i32
    %7 = arith.extui %6 : i1 to i32
    %c0_i32_5 = arith.constant 0 : i32
    %8 = arith.cmpi ne, %7, %c0_i32_5 : i32
    scf.if %8 {
      %c0_8 = arith.constant 0 : index
      %c0_9 = arith.constant 0 : index
      %12 = vector.load %arg9[%c0_8, %c0_9] : memref<16x128xf32, #tpu.memory_space<vmem>>, vector<16x128xf32>
      %13 = arith.addf %12, %2 : vector<16x128xf32>
      %c0_10 = arith.constant 0 : index
      %c0_11 = arith.constant 0 : index
      %14 = vector.load %arg9[%c0_10, %c0_11] : memref<16x128xf32, #tpu.memory_space<vmem>>, vector<16x128xf32>
      tpu.vector_store %arg9[%c0_10, %c0_11], %13 {strides = array<i32>} : memref<16x128xf32, #tpu.memory_space<vmem>>, vector<16x128xf32>,
    } else {
    }
    %c0_i32_6 = arith.constant 0 : i32
    %9 = arith.cmpi eq, %arg2, %c0_i32_6 : i32
    %10 = arith.extui %9 : i1 to i32
    %c0_i32_7 = arith.constant 0 : i32
    %11 = arith.cmpi ne, %10, %c0_i32_7 : i32
    scf.if %11 {
      %c0_8 = arith.constant 0 : index
      %c0_9 = arith.constant 0 : index
      %12 = vector.load %arg6[%c0_8, %c0_9] : memref<16x4xf32, #tpu.memory_space<vmem>>, vector<16x4xf32>
      %c0_10 = arith.constant 0 : index
      %c0_11 = arith.constant 0 : index
      %13 = vector.load %arg7[%c0_10, %c0_11] : memref<128x4xf32, #tpu.memory_space<vmem>>, vector<128x4xf32>
      %cst_12 = arith.constant dense<0.000000e+00> : vector<16x128xf32>
      %14 = tpu.matmul %12, %13, %cst_12 {dimension_numbers = #tpu.dot_dimension_numbers<[1], [1], [0], [0], [0, 0, 1, 0], [], []>} : vector<16x4xf32>, vector<128x4xf32>, vector<16x128xf32> -> vector<16x128xf32>
      %c0_13 = arith.constant 0 : index
      %c0_14 = arith.constant 0 : index
      %15 = vector.load %arg9[%c0_13, %c0_14] : memref<16x128xf32, #tpu.memory_space<vmem>>, vector<16x128xf32>
      %c0_15 = arith.constant 0 : index
      %c0_16 = arith.constant 0 : index
      %16 = vector.load %arg5[%c0_15, %c0_16] : memref<1x128xf32, #tpu.memory_space<vmem>>, vector<1x128xf32>
      %17 = vector.broadcast %16 : vector<1x128xf32> to vector<16x128xf32>
      %18 = arith.addf %15, %17 : vector<16x128xf32>
      %19 = arith.addf %18, %14 : vector<16x128xf32>
      %c0_17 = arith.constant 0 : index
      %c0_18 = arith.constant 0 : index
      %20 = vector.load %arg8[%c0_17, %c0_18] : memref<16x128xf32, #tpu.memory_space<vmem>>, vector<16x128xf32>
      tpu.vector_store %arg8[%c0_17, %c0_18], %19 {strides = array<i32>} : memref<16x128xf32, #tpu.memory_space<vmem>>, vector<16x128xf32>,
    } else {
    }
    return
  }
  func.func @transform_0(%arg0: i32, %arg1: i32, %arg2: i32) -> (i32, i32) {
    %c0_i32 = arith.constant 0 : i32
    return %arg0, %arg2 : i32, i32
  }
  func.func @transform_1(%arg0: i32, %arg1: i32, %arg2: i32) -> (i32, i32) {
    %c0_i32 = arith.constant 0 : i32
    return %arg1, %arg2 : i32, i32
  }
  func.func @transform_2(%arg0: i32, %arg1: i32, %arg2: i32) -> (i32, i32) {
    %c0_i32 = arith.constant 0 : i32
    %c0_i32_0 = arith.constant 0 : i32
    return %c0_i32, %arg1 : i32, i32
  }
  func.func @transform_3(%arg0: i32, %arg1: i32, %arg2: i32) -> (i32, i32) {
    %c0_i32 = arith.constant 0 : i32
    %c0_i32_0 = arith.constant 0 : i32
    return %arg0, %c0_i32 : i32, i32
  }
  func.func @transform_4(%arg0: i32, %arg1: i32, %arg2: i32) -> (i32, i32) {
    %c0_i32 = arith.constant 0 : i32
    %c0_i32_0 = arith.constant 0 : i32
    return %arg1, %c0_i32 : i32, i32
  }
  func.func @transform_5(%arg0: i32, %arg1: i32, %arg2: i32) -> (i32, i32) {
    %c0_i32 = arith.constant 0 : i32
    return %arg0, %arg1 : i32, i32
  }
}

</mosaic_0001>

<llo_original>
// kernel: tpu_custom_call.1
$region0: #{tpu_custom_call.1}
  #allocation0 [shape = 'u32[]', space=smem, size = 0x4, offset = 0x4, fixed_abs, tag = 'smem constant byte address 0x4 - core index']
  #allocation1 [shape = 'u32[144,128]{1,0:T(1,128)}', space=vmem, size = 0x12000, scoped, tag = 'internal scratch']
  #allocation2 [shape = 'f32[16,128]{1,0:T(8,128)}', space=vmem, size = 0x2000, scoped, tag = 'scratch operand']
  %s0 = inlined_call_operand.vmem [shape: f32[16,128], index: 0, kind: input, shape index: {}]
  %s1 = inlined_call_operand.vmem [shape: f32[128,128], index: 1, kind: input, shape index: {}]
  %s2 = inlined_call_operand.vmem [shape: f32[1,128], index: 2, kind: input, shape index: {}]
  %s3 = inlined_call_operand.vmem [shape: f32[16,4], index: 3, kind: input, shape index: {}]
  %s4 = inlined_call_operand.vmem [shape: f32[128,4], index: 4, kind: input, shape index: {}]
  %s5 = inlined_call_operand.hbm [shape: f32[16,128], index: 5, kind: output, shape index: {}]
  %s6 = sld [smem:[#allocation0]]
  $region42: #{tpu_custom_call.1} parent=0
    _
  %s8 = ssub.s32 1, %s6
  %s9 = scalar_select 0, %s8, %s6
  $region1: #{tpu_custom_call.1} parent=0
    #allocation3 [shape = 'u8[8192]{0}', space=vmem, size = 0x2000, scoped, tag = 'output window, operand 0, single buffered']
    #allocation4 [shape = 's32[1]{0}', space=sflag, size = 0x4, scoped, tag = 'scoped memory for tpu_custom_call.1']
    %10 = vsyncpa [#allocation4], 0
    // Predicated region
    $region2: #{tpu_custom_call.1} parent=1 // pred_check
      _
    $region3: #{tpu_custom_call.1} parent=1 // pred_check_branch
      %12 = sbr.rel (0) target = $region5
    $region4: #{tpu_custom_call.1} parent=1 // pred_region
      _
    $region5: #{tpu_custom_call.1} parent=1 // pred_fallthru
      _
    // Predicated region
    $region6: #{tpu_custom_call.1} parent=1 // pred_check
      _
    $region7: #{tpu_custom_call.1} parent=1 // pred_check_branch
      %14 = sbr.rel (0) target = $region9
    $region8: #{tpu_custom_call.1} parent=1 // pred_region
      _
    $region9: #{tpu_custom_call.1} parent=1 // pred_fallthru
      _
    // Predicated region
    $region10: #{tpu_custom_call.1} parent=1 // pred_check
      _
    $region11: #{tpu_custom_call.1} parent=1 // pred_check_branch
      %16 = sbr.rel (0) target = $region13
    $region12: #{tpu_custom_call.1} parent=1 // pred_region
      _
    $region13: #{tpu_custom_call.1} parent=1 // pred_fallthru
      _
    // Predicated region
    $region14: #{tpu_custom_call.1} parent=1 // pred_check
      _
    $region15: #{tpu_custom_call.1} parent=1 // pred_check_branch
      %18 = sbr.rel (0) target = $region17
    $region16: #{tpu_custom_call.1} parent=1 // pred_region
      _
    $region17: #{tpu_custom_call.1} parent=1 // pred_fallthru
      _
    // Predicated region
    $region18: #{tpu_custom_call.1} parent=1 // pred_check
      _
    $region19: #{tpu_custom_call.1} parent=1 // pred_check_branch
      %20 = sbr.rel (0) target = $region21
    $region20: #{tpu_custom_call.1} parent=1 // pred_region
      _
    $region21: #{tpu_custom_call.1} parent=1 // pred_fallthru
      _
    %v21 = vld [vmem:[%s0] sm:$0xff]
    %v22 = vld [vmem:[%s0 + $0x8] sm:$0xff]
    %v23 = vld [vmem:[%s1] sm:$0xff]
    %v24 = vld [vmem:[%s1 + $0x8] sm:$0xff]
    %v25 = vld [vmem:[%s1 + $0x10] sm:$0xff]
    %v26 = vld [vmem:[%s1 + $0x18] sm:$0xff]
    %v27 = vld [vmem:[%s1 + $0x20] sm:$0xff]
    %v28 = vld [vmem:[%s1 + $0x28] sm:$0xff]
    %v29 = vld [vmem:[%s1 + $0x30] sm:$0xff]
    %v30 = vld [vmem:[%s1 + $0x38] sm:$0xff]
    %v31 = vld [vmem:[%s1 + $0x40] sm:$0xff]
    %v32 = vld [vmem:[%s1 + $0x48] sm:$0xff]
    %v33 = vld [vmem:[%s1 + $0x50] sm:$0xff]
    %v34 = vld [vmem:[%s1 + $0x58] sm:$0xff]
    %v35 = vld [vmem:[%s1 + $0x60] sm:$0xff]
    %v36 = vld [vmem:[%s1 + $0x68] sm:$0xff]
    %v37 = vld [vmem:[%s1 + $0x70] sm:$0xff]
    %v38 = vld [vmem:[%s1 + $0x78] sm:$0xff]
    %39 = vmatprep.subr.mxu0 0.0
    %40 = vmatpush1.xpose.msra.mxu0 %v23
    %41 = vmatprep.subr.mxu0 0.0
    %42 = vmatpush1.xpose.msra.mxu0 %v24
    %43 = vmatprep.subr.mxu0 0.0
    %44 = vmatpush1.xpose.msra.mxu0 %v25
    %45 = vmatprep.subr.mxu0 0.0
    %46 = vmatpush1.xpose.msra.mxu0 %v26
    %47 = vmatprep.subr.mxu0 0.0
    %48 = vmatpush1.xpose.msra.mxu0 %v27
    %49 = vmatprep.subr.mxu0 0.0
    %50 = vmatpush1.xpose.msra.mxu0 %v28
    %51 = vmatprep.subr.mxu0 0.0
    %52 = vmatpush1.xpose.msra.mxu0 %v29
    %53 = vmatprep.subr.mxu0 0.0
    %54 = vmatpush1.xpose.msra.mxu0 %v30
    %55 = vmatprep.subr.mxu0 0.0
    %56 = vmatpush1.xpose.msra.mxu0 %v31
    %57 = vmatprep.subr.mxu0 0.0
    %58 = vmatpush1.xpose.msra.mxu0 %v32
    %59 = vmatprep.subr.mxu0 0.0
    %60 = vmatpush1.xpose.msra.mxu0 %v33
    %61 = vmatprep.subr.mxu0 0.0
    %62 = vmatpush1.xpose.msra.mxu0 %v34
    %63 = vmatprep.subr.mxu0 0.0
    %64 = vmatpush1.xpose.msra.mxu0 %v35
    %65 = vmatprep.subr.mxu0 0.0
    %66 = vmatpush1.xpose.msra.mxu0 %v36
    %67 = vmatprep.subr.mxu0 0.0
    %68 = vmatpush1.xpose.msra.mxu0 %v37
    %69 = vmatprep.subr.mxu0 0.0
    %70 = vmatpush1.xpose.msra.mxu0 %v38
    %71 = vmatprep.subr.mxu0 0.0
    %72 = vmatpush1.xpose.msra.mxu0 0.0
    %73 = vmatprep.subr.mxu0 0.0
    %74 = vmatpush1.xpose.msra.mxu0 0.0
    %75 = vmatprep.subr.mxu0 0.0
    %76 = vmatpush1.xpose.msra.mxu0 0.0
    %77 = vmatprep.subr.mxu0 0.0
    %78 = vmatpush1.xpose.msra.mxu0 0.0
    %79 = vmatprep.subr.mxu0 0.0
    %80 = vmatpush1.xpose.msra.mxu0 0.0
    %81 = vmatprep.subr.mxu0 0.0
    %82 = vmatpush1.xpose.msra.mxu0 0.0
    %83 = vmatprep.subr.mxu0 0.0
    %84 = vmatpush1.xpose.msra.mxu0 0.0
    %85 = vmatprep.subr.mxu0 0.0
    %86 = vmatpush1.xpose.msra.mxu0 0.0
    %87 = vmatprep.subr.mxu0 0.0
    %88 = vmatpush1.xpose.msra.mxu0 0.0
    %89 = vmatprep.subr.mxu0 0.0
    %90 = vmatpush1.xpose.msra.mxu0 0.0
    %91 = vmatprep.subr.mxu0 0.0
    %92 = vmatpush1.xpose.msra.mxu0 0.0
    %93 = vmatprep.subr.mxu0 0.0
    %94 = vmatpush1.xpose.msra.mxu0 0.0
    %95 = vmatprep.subr.mxu0 0.0
    %96 = vmatpush1.xpose.msra.mxu0 0.0
    %97 = vmatprep.subr.mxu0 0.0
    %98 = vmatpush1.xpose.msra.mxu0 0.0
    %99 = vmatprep.subr.mxu0 0.0
    %100 = vmatpush1.xpose.msra.mxu0 0.0
    %101 = vmatprep.subr.mxu0 0.0
    %102 = vmatpush1.xpose.msra.mxu0 0.0
    %103 = vmatprep.mubr.f32.mxu0 0.0
    %104 = vmatmul.mubr.f32.gmra.mrb[0].mxu0 %v21
    %v105 = vpop.f32.mrb[0].mxu0
    %v106 = vadd.f32 0.0, %v105
    %v107 = vpop.f32.mrb[0].mxu0
    %108 = vmatprep.mubr.f32.mxu0 0.0
    %109 = vmatmul.mubr.f32.gmra.mrb[0].mxu0 %v22
    %v110 = vpop.f32.mrb[0].mxu0
    %v111 = vadd.f32 0.0, %v110
    %v112 = vpop.f32.mrb[0].mxu0
    %113 = vdwg.mxu0
    %p114 = scmp.eq.s32.totalorder 0, 0
    // Predicated region
    $region22: #{tpu_custom_call.1} parent=1 // pred_check
      %p115 = pneg %p114
    $region23: #{tpu_custom_call.1} parent=1 // pred_check_branch
      %117 = sbr.rel (%p115) target = $region25
    $region24: #{tpu_custom_call.1} parent=1 // pred_region
      %118 = vst [vmem:[#allocation2] sm:$0xff] %v106
      %119 = vst [vmem:[#allocation2 + $0x8] sm:$0xff] %v111
    $region25: #{tpu_custom_call.1} parent=1 // pred_fallthru
      _
    %p120 = scmp.gt.s32.totalorder 0, 0
    // Predicated region
    $region26: #{tpu_custom_call.1} parent=1 // pred_check
      %p121 = pneg %p120
    $region27: #{tpu_custom_call.1} parent=1 // pred_check_branch
      %123 = sbr.rel (%p121) target = $region29
    $region28: #{tpu_custom_call.1} parent=1 // pred_region
      %v124 = vld [vmem:[#allocation2] sm:$0xff]
      %v125 = vld [vmem:[#allocation2 + $0x8] sm:$0xff]
      %v126 = vadd.f32 %v124, %v106
      %v127 = vadd.f32 %v125, %v111
      %128 = vst [vmem:[#allocation2] sm:$0xff] %v126
      %129 = vst [vmem:[#allocation2 + $0x8] sm:$0xff] %v127
    $region29: #{tpu_custom_call.1} parent=1 // pred_fallthru
      _
    // Predicated region
    $region30: #{tpu_custom_call.1} parent=1 // pred_check
      %p130 = pneg %p114
    $region31: #{tpu_custom_call.1} parent=1 // pred_check_branch
      %132 = sbr.rel (%p130) target = $region33
    $region32: #{tpu_custom_call.1} parent=1 // pred_region
      %v133 = vld [vmem:[%s3] sm:$0xff]
      %v134 = vld [vmem:[%s3 + $0x8] sm:$0xff]
      %v135 = vld [vmem:[%s4] sm:$0xff]
      %v136 = vld [vmem:[%s4 + $0x8] sm:$0xff]
      %v137 = vld [vmem:[%s4 + $0x10] sm:$0xff]
      %v138 = vld [vmem:[%s4 + $0x18] sm:$0xff]
      %v139 = vld [vmem:[%s4 + $0x20] sm:$0xff]
      %v140 = vld [vmem:[%s4 + $0x28] sm:$0xff]
      %v141 = vld [vmem:[%s4 + $0x30] sm:$0xff]
      %v142 = vld [vmem:[%s4 + $0x38] sm:$0xff]
      %v143 = vld [vmem:[%s4 + $0x40] sm:$0xff]
      %v144 = vld [vmem:[%s4 + $0x48] sm:$0xff]
      %v145 = vld [vmem:[%s4 + $0x50] sm:$0xff]
      %v146 = vld [vmem:[%s4 + $0x58] sm:$0xff]
      %v147 = vld [vmem:[%s4 + $0x60] sm:$0xff]
      %v148 = vld [vmem:[%s4 + $0x68] sm:$0xff]
      %v149 = vld [vmem:[%s4 + $0x70] sm:$0xff]
      %v150 = vld [vmem:[%s4 + $0x78] sm:$0xff]
      %vm151 = vcmask 31744
      %v153 = vsel %vm151, %v133, 0
      %v156 = vsel %vm151, %v134, 0
      %v159 = vsel %vm151, %v135, 0
      %v162 = vsel %vm151, %v136, 0
      %v165 = vsel %vm151, %v137, 0
      %v168 = vsel %vm151, %v138, 0
      %v171 = vsel %vm151, %v139, 0
      %v174 = vsel %vm151, %v140, 0
      %v177 = vsel %vm151, %v141, 0
      %v180 = vsel %vm151, %v142, 0
      %v183 = vsel %vm151, %v143, 0
      %v186 = vsel %vm151, %v144, 0
      %v189 = vsel %vm151, %v145, 0
      %v192 = vsel %vm151, %v146, 0
      %v195 = vsel %vm151, %v147, 0
      %v198 = vsel %vm151, %v148, 0
      %v201 = vsel %vm151, %v149, 0
      %v204 = vsel %vm151, %v150, 0
      %206 = vmatprep.subr.mxu0 0.0
      %207 = vmatpush1.xpose.msra.mxu0 %v159
      %208 = vmatprep.subr.mxu0 0.0
      %209 = vmatpush1.xpose.msra.mxu0 %v162
      %210 = vmatprep.subr.mxu0 0.0
      %211 = vmatpush1.xpose.msra.mxu0 %v165
      %212 = vmatprep.subr.mxu0 0.0
      %213 = vmatpush1.xpose.msra.mxu0 %v168
      %214 = vmatprep.subr.mxu0 0.0
      %215 = vmatpush1.xpose.msra.mxu0 %v171
      %216 = vmatprep.subr.mxu0 0.0
      %217 = vmatpush1.xpose.msra.mxu0 %v174
      %218 = vmatprep.subr.mxu0 0.0
      %219 = vmatpush1.xpose.msra.mxu0 %v177
      %220 = vmatprep.subr.mxu0 0.0
      %221 = vmatpush1.xpose.msra.mxu0 %v180
      %222 = vmatprep.subr.mxu0 0.0
      %223 = vmatpush1.xpose.msra.mxu0 %v183
      %224 = vmatprep.subr.mxu0 0.0
      %225 = vmatpush1.xpose.msra.mxu0 %v186
      %226 = vmatprep.subr.mxu0 0.0
      %227 = vmatpush1.xpose.msra.mxu0 %v189
      %228 = vmatprep.subr.mxu0 0.0
      %229 = vmatpush1.xpose.msra.mxu0 %v192
      %230 = vmatprep.subr.mxu0 0.0
      %231 = vmatpush1.xpose.msra.mxu0 %v195
      %232 = vmatprep.subr.mxu0 0.0
      %233 = vmatpush1.xpose.msra.mxu0 %v198
      %234 = vmatprep.subr.mxu0 0.0
      %235 = vmatpush1.xpose.msra.mxu0 %v201
      %236 = vmatprep.subr.mxu0 0.0
      %237 = vmatpush1.xpose.msra.mxu0 %v204
      %238 = vmatprep.subr.mxu0 0.0
      %239 = vmatpush1.xpose.msra.mxu0 0.0
      %240 = vmatprep.subr.mxu0 0.0
      %241 = vmatpush1.xpose.msra.mxu0 0.0
      %242 = vmatprep.subr.mxu0 0.0
      %243 = vmatpush1.xpose.msra.mxu0 0.0
      %244 = vmatprep.subr.mxu0 0.0
      %245 = vmatpush1.xpose.msra.mxu0 0.0
      %246 = vmatprep.subr.mxu0 0.0
      %247 = vmatpush1.xpose.msra.mxu0 0.0
      %248 = vmatprep.subr.mxu0 0.0
      %249 = vmatpush1.xpose.msra.mxu0 0.0
      %250 = vmatprep.subr.mxu0 0.0
      %251 = vmatpush1.xpose.msra.mxu0 0.0
      %252 = vmatprep.subr.mxu0 0.0
      %253 = vmatpush1.xpose.msra.mxu0 0.0
      %254 = vmatprep.subr.mxu0 0.0
      %255 = vmatpush1.xpose.msra.mxu0 0.0
      %256 = vmatprep.subr.mxu0 0.0
      %257 = vmatpush1.xpose.msra.mxu0 0.0
      %258 = vmatprep.subr.mxu0 0.0
      %259 = vmatpush1.xpose.msra.mxu0 0.0
      %260 = vmatprep.subr.mxu0 0.0
      %261 = vmatpush1.xpose.msra.mxu0 0.0
      %262 = vmatprep.subr.mxu0 0.0
      %263 = vmatpush1.xpose.msra.mxu0 0.0
      %264 = vmatprep.subr.mxu0 0.0
      %265 = vmatpush1.xpose.msra.mxu0 0.0
      %266 = vmatprep.subr.mxu0 0.0
      %267 = vmatpush1.xpose.msra.mxu0 0.0
      %268 = vmatprep.subr.mxu0 0.0
      %269 = vmatpush1.xpose.msra.mxu0 0.0
      %270 = vmatprep.mubr.f32.mxu0 0.0
      %271 = vmatmul.mubr.f32.gmra.mrb[0].mxu0 %v153
      %v272 = vpop.f32.mrb[0].mxu0
      %v273 = vadd.f32 0.0, %v272
      %v274 = vpop.f32.mrb[0].mxu0
      %275 = vmatprep.mubr.f32.mxu0 0.0
      %276 = vmatmul.mubr.f32.gmra.mrb[0].mxu0 %v156
      %v277 = vpop.f32.mrb[0].mxu0
      %v278 = vadd.f32 0.0, %v277
      %v279 = vpop.f32.mrb[0].mxu0
      %280 = vdwg.mxu0
      %v281 = vld [vmem:[#allocation2] sm:$0xff]
      %v282 = vld [vmem:[#allocation2 + $0x8] sm:$0xff]
      %v283 = vld [vmem:[%s2] sm:$0x1]
      %v285 = vlaneseq
      %v286 = vshrl.u32 %v285, 7
      %v287 = vsub.s32 0, %v286
      %v288 = vrot.slane %v283, %v287
      %v290 = vadd.f32 %v281, %v288
      %v291 = vadd.f32 %v282, %v288
      %v292 = vadd.f32 %v290, %v273
      %v293 = vadd.f32 %v291, %v278
      %294 = vst [vmem:[#allocation3] sm:$0xff] %v292
      %295 = vst [vmem:[#allocation3 + $0x8] sm:$0xff] %v293
    $region33: #{tpu_custom_call.1} parent=1 // pred_fallthru
      _
    // Predicated region
    $region34: #{tpu_custom_call.1} parent=1 // pred_check
      _
    $region35: #{tpu_custom_call.1} parent=1 // pred_check_branch
      %297 = sbr.rel (0) target = $region37
    $region36: #{tpu_custom_call.1} parent=1 // pred_region
      %s299 = ssub.s32 256, 256
      %300 = vsyncadd [#allocation4], %s299
      %s301 = sshll.u32 [#allocation3], 4
      %s302 = int_to_ptr.vmem [resolvable:$true] %s301
      %307 = dma.vmem_to_hbm [thread:$0]  %s302, 256, %s5, [#allocation4], 128, 128, 8
    $region37: #{tpu_custom_call.1} parent=1 // pred_fallthru
      _
    // Predicated region
    $region38: #{tpu_custom_call.1} parent=1 // pred_check
      _
    $region39: #{tpu_custom_call.1} parent=1 // pred_check_branch
      %309 = sbr.rel (0) target = $region41
    $region40: #{tpu_custom_call.1} parent=1 // pred_region
      %310 = dma.done [#allocation4], 256
    $region41: #{tpu_custom_call.1} parent=1 // pred_fallthru
      _
    %311 = vsyncpa [#allocation4], 1

</llo_original>
